<compile_context>
chip_gen: v6e
topology: v6e:2x2x1
jax: 0.10.0
libtpu: 0.0.40
codegen_flags: <defaults>
</compile_context>

<pallas_src>
import functools

import numpy as np
import jax
import jax.numpy as jnp
from jax.experimental import pallas as pl
from jax.experimental.pallas import tpu as pltpu

K = 5
PAD = K // 2
EPS = 1e-5
NEG_SLOPE = 0.01


# ----------------------------------------------------------------- kernel ---

def upsample_block_kernel(x_ref, w1_ref, w2_ref, w3_ref, pos_ref, o_ref, col_ref, *,
                          seg_len, last_layer):
    """All activations are (C, N*seg_len) f32 slabs (batch folded into the lane axis).

    col_ref is a persistent (rows_max, N*L) bf16 im2col scratch reused by all three convs.
    """
    nl = x_ref.shape[-1]
    c_mid = o_ref.shape[0] // 2          # channel count of every post-conv1 slab

    pos = pos_ref[...]                    # (1, NL) int32: lane position within its sample
    # Hoisted per-delta segment-validity masks (JAX does not CSE the compares); the
    # broadcast to (C, NL) happens inside jnp.where at use sites.
    masks = {d: jnp.logical_and(pos + d >= 0, pos + d < seg_len) for d in (-2, -1, 1, 2)}

    def shift(x, delta, edge):
        """y[c, j] = x[c, j + delta] within each length-`seg_len` segment.

        Out-of-segment sources are edge-replicated (edge=True, interpolation clamp) or
        zeroed (edge=False, conv zero padding).  The lane rotation is an XLU roll; the
        hoisted mask keeps samples in the folded batch independent.
        """
        if delta == 0:
            return x
        rolled = pltpu.roll(x, (-delta) % nl, 1)          # rolled[c, j] = x[c, j + delta]
        return jnp.where(masks[delta], rolled, x if edge else 0.0)

    def conv(w_ref, taps):
        """'same' Conv1d as one MXU matmul over the shared bf16 im2col scratch.

        Tap k is written into scratch rows [k*C, (k+1)*C); weight columns follow the same
        (tap-major, channel-minor) order.  Operands bf16, accumulation f32.
        """
        c = taps[0].shape[0]
        for k, t in enumerate(taps):
            col_ref[k * c:(k + 1) * c, :] = t.astype(jnp.bfloat16)
        rows = len(taps) * c
        return jnp.dot(w_ref[...], col_ref[0:rows, :],
                       preferred_element_type=jnp.float32)

    def conv_taps(x):
        return [shift(x, k - PAD, edge=False) for k in range(K)]

    def bn_stats(sums, sqs, count):
        """Single-pass training-mode BN stats (gamma=1, beta=0, biased variance)."""
        mean = sums / count
        var = jnp.maximum(sqs / count - mean * mean, 0.0)
        return mean, jax.lax.rsqrt(var + EPS)

    x = x_ref[...].astype(jnp.float32)

    # self.conv: Conv1d -> BN -> Conv1d -> BN  (normalize is one fused (y-mean)*inv pass)
    y = conv(w1_ref, conv_taps(x))
    mean, inv = bn_stats(jnp.sum(y, 1, keepdims=True),
                         jnp.sum(y * y, 1, keepdims=True), float(nl))
    h = (y - mean) * inv

    y = conv(w2_ref, conv_taps(h))
    mean, inv = bn_stats(jnp.sum(y, 1, keepdims=True),
                         jnp.sum(y * y, 1, keepdims=True), float(nl))
    h = (y - mean) * inv

    # F.interpolate(scale_factor=2, mode='linear', align_corners=False), polyphase form:
    #   up[2i]   = 0.75*h[i] + 0.25*h[i-1]   (clamped at i == 0)
    #   up[2i+1] = 0.75*h[i] + 0.25*h[i+1]   (clamped at i == L-1)
    even = 0.75 * h + 0.25 * shift(h, -1, edge=True)
    odd = 0.75 * h + 0.25 * shift(h, +1, edge=True)

    # self.out conv on the (virtual) interleaved signal — both phases in ONE matmul over
    # the union tap set [e[-1], o[-1], e, o, e[+1], o[+1]]:
    #   out[2j]   = w0*E[j-1] + w1*O[j-1] + w2*E[j]   + w3*O[j]   + w4*E[j+1]
    #   out[2j+1] =             w0*O[j-1] + w1*E[j]   + w2*O[j]   + w3*E[j+1] + w4*O[j+1]
    taps6 = [shift(even, -1, edge=False), shift(odd, -1, edge=False), even, odd,
             shift(even, +1, edge=False), shift(odd, +1, edge=False)]
    y = conv(w3_ref, taps6)                      # (2*C, NL): rows [0:C] even, [C:2C] odd

    if not last_layer:
        # BN over both phases jointly == BatchNorm1d on the length-2L output.
        s = jnp.sum(y, 1, keepdims=True)
        ss = jnp.sum(y * y, 1, keepdims=True)
        mean, inv = bn_stats(s[0:c_mid] + s[c_mid:], ss[0:c_mid] + ss[c_mid:],
                             float(2 * nl))
        mean2 = jnp.concatenate([mean, mean], axis=0)
        inv2 = jnp.concatenate([inv, inv], axis=0)
        y = (y - mean2) * inv2
        y = jnp.where(y >= 0, y, NEG_SLOPE * y)

    o_ref[...] = y.astype(o_ref.dtype)


# ---------------------------------------------------------------- wrapper ---

def _pack_weight(w):
    """PyTorch (C_out, C_in, K) -> (C_out, K*C_in) bf16, column = k*C_in + c (tap-major)."""
    c_out, c_in, k = w.shape
    return jnp.transpose(w, (0, 2, 1)).reshape(c_out, k * c_in).astype(jnp.bfloat16)


def _pack_out_weight(w):
    """PyTorch (C_out, C, K) -> merged polyphase (2*C_out, 6*C) bf16 weight.

    Union tap order is [e[-1], o[-1], e, o, e[+1], o[+1]]; the even-phase rows use taps
    0..4 with w_k, the odd-phase rows use taps 1..5 with w_k; the unused tap is zero.
    """
    c_out, c, k = w.shape
    wt = jnp.transpose(w, (0, 2, 1))                       # (C_out, K, C)
    z = jnp.zeros((c_out, 1, c), w.dtype)
    w_even = jnp.concatenate([wt, z], axis=1).reshape(c_out, (k + 1) * c)
    w_odd = jnp.concatenate([z, wt], axis=1).reshape(c_out, (k + 1) * c)
    return jnp.concatenate([w_even, w_odd], axis=0).astype(jnp.bfloat16)


def _vmem_limit_bytes():
    """Generation-aware scoped-VMEM budget (v7x has 64 MiB/TC, v5e/v6e have 128 MiB)."""
    try:
        cap = getattr(pltpu.get_tpu_info(), "vmem_capacity_bytes", None) or (128 << 20)
    except Exception:
        cap = 128 << 20
    return int(min(3 * cap // 4, 100 << 20))


def upsample_block(x, w1, w2, w3, last_layer=False):
    n, c_in, length = x.shape
    c_out = w1.shape[0]
    nl = n * length

    # Fold batch into lanes: (N, C, L) -> (C, N*L).  Wrapper-side layout plumbing only.
    x_slab = jnp.transpose(x, (1, 0, 2)).reshape(c_in, nl)
    # Position of each lane within its sample (drives the halo masks in the kernel).
    pos = (jnp.arange(nl, dtype=jnp.int32) % length).reshape(1, nl)

    rows_max = max(K * c_in, K * c_out, (K + 1) * c_out)   # shared im2col scratch rows

    kernel = functools.partial(upsample_block_kernel, seg_len=length,
                               last_layer=last_layer)
    out = pl.pallas_call(
        kernel,
        out_shape=jax.ShapeDtypeStruct((2 * c_out, nl), x.dtype),
        in_specs=[pl.BlockSpec(memory_space=pltpu.MemorySpace.VMEM)] * 5,
        out_specs=pl.BlockSpec(memory_space=pltpu.MemorySpace.VMEM),
        scratch_shapes=[pltpu.VMEM((rows_max, nl), jnp.bfloat16)],
        compiler_params=pltpu.CompilerParams(vmem_limit_bytes=_vmem_limit_bytes()),
    )(x_slab, _pack_weight(w1), _pack_weight(w2), _pack_out_weight(w3), pos)

    # out[p*C + c, n*L + i] -> result[n, c, 2*i + p]: interleave the phases in the wrapper.
    out = out.reshape(2, c_out, n, length)
    out = jnp.transpose(out, (2, 1, 3, 0)).reshape(n, c_out, 2 * length)
    return out


# ------------------------------------------------------ pure-JAX reference --

def make_upsample_matrix(length):
    """(L, 2L) matrix for PyTorch linear upsample x2, align_corners=False (ref only)."""
    u = np.zeros((length, 2 * length), dtype=np.float32)
    for t in range(2 * length):
        src = max((t + 0.5) / 2.0 - 0.5, 0.0)
        x0 = int(np.floor(src))
        x1 = min(x0 + 1, length - 1)
        frac = src - x0
        u[x0, t] += 1.0 - frac
        u[x1, t] += frac
    return jnp.asarray(u)


def ref_forward(x, w1, w2, w3, last_layer=False, matmul_dtype=jnp.float32):
    def conv(y, w):
        return jax.lax.conv_general_dilated(
            y.astype(matmul_dtype), w.astype(matmul_dtype),
            window_strides=(1,), padding=[(PAD, PAD)],
            dimension_numbers=("NCH", "OIH", "NCH"),
            preferred_element_type=jnp.float32)

    def bn(y):
        mean = jnp.mean(y, axis=(0, 2), keepdims=True)
        var = jnp.mean((y - mean) ** 2, axis=(0, 2), keepdims=True)
        return (y - mean) / jnp.sqrt(var + EPS)

    h = bn(conv(bn(conv(x, w1)), w2))
    up = make_upsample_matrix(h.shape[-1])
    h = jnp.einsum("ncl,lt->nct", h, up)
    h = conv(h, w3)
    if not last_layer:
        h = bn(h)
        h = jnp.where(h >= 0, h, NEG_SLOPE * h)
    return h


# ------------------------------------------------------------------- main ---

if __name__ == "__main__":
    key = jax.random.PRNGKey(0)
    kx, k1, k2, k3 = jax.random.split(key, 4)

    # N*L = 128: one full lane row, lane-dense output slab.
    N, C_IN, C_OUT, L = 2, 8, 8, 64

    x = jax.random.normal(kx, (N, C_IN, L), dtype=jnp.float32)

    # xavier_normal_ for the two convs in self.conv
    std1 = float(np.sqrt(2.0 / (C_IN * K + C_OUT * K)))
    std2 = float(np.sqrt(2.0 / (C_OUT * K + C_OUT * K)))
    w1 = std1 * jax.random.normal(k1, (C_OUT, C_IN, K), dtype=jnp.float32)
    w2 = std2 * jax.random.normal(k2, (C_OUT, C_OUT, K), dtype=jnp.float32)
    # self.out keeps PyTorch's default Conv1d init (kaiming-uniform-like bound)
    bound3 = float(1.0 / np.sqrt(C_OUT * K))
    w3 = jax.random.uniform(k3, (C_OUT, C_OUT, K), dtype=jnp.float32,
                            minval=-bound3, maxval=bound3)

    for last in (False, True):
        out = jax.block_until_ready(upsample_block(x, w1, w2, w3, last_layer=last))
        assert out.shape == (N, C_OUT, 2 * L), out.shape

        # Reference using the same bf16-MXU-operand / f32-accumulate policy (structure check).
        ref_bf16 = jax.block_until_ready(
            ref_forward(x, w1, w2, w3, last_layer=last, matmul_dtype=jnp.bfloat16))
        np.testing.assert_allclose(np.asarray(out), np.asarray(ref_bf16),
                                   rtol=2e-2, atol=2e-2)

        # Full-f32 reference: loose tolerance only needs to bound bf16 operand rounding.
        ref_f32 = jax.block_until_ready(
            ref_forward(x, w1, w2, w3, last_layer=last, matmul_dtype=jnp.float32))
        np.testing.assert_allclose(np.asarray(out), np.asarray(ref_f32),
                                   rtol=1e-1, atol=1e-1)

    print("KERNEL_OK")
</pallas_src>

<mosaic_0001>
module attributes {stable_mosaic.version = 11 : i64} {
  func.func @upsample_block_kernel(%arg0: memref<8x128xf32, #tpu.memory_space<vmem>>, %arg1: memref<8x40xbf16, #tpu.memory_space<vmem>>, %arg2: memref<8x40xbf16, #tpu.memory_space<vmem>>, %arg3: memref<16x48xbf16, #tpu.memory_space<vmem>>, %arg4: memref<1x128xi32, #tpu.memory_space<vmem>>, %arg5: memref<16x128xf32, #tpu.memory_space<vmem>>, %arg6: memref<48x128xbf16, #tpu.memory_space<vmem>>) attributes {dimension_semantics = [], scalar_prefetch = 0 : i64, scratch_operands = 1 : i64, tpu.core_type = #tpu.core_type<tc>} {
    %c0 = arith.constant 0 : index
    %c0_0 = arith.constant 0 : index
    %0 = vector.load %arg4[%c0, %c0_0] : memref<1x128xi32, #tpu.memory_space<vmem>>, vector<1x128xi32>
    %c-2_i32 = arith.constant -2 : i32
    %1 = vector.broadcast %c-2_i32 : i32 to vector<1x128xi32>
    %2 = arith.addi %0, %1 : vector<1x128xi32>
    %c0_i32 = arith.constant 0 : i32
    %3 = vector.broadcast %c0_i32 : i32 to vector<1x128xi32>
    %4 = arith.cmpi sge, %2, %3 : vector<1x128xi32>
    %c-2_i32_1 = arith.constant -2 : i32
    %5 = vector.broadcast %c-2_i32_1 : i32 to vector<1x128xi32>
    %6 = arith.addi %0, %5 : vector<1x128xi32>
    %c64_i32 = arith.constant 64 : i32
    %7 = vector.broadcast %c64_i32 : i32 to vector<1x128xi32>
    %8 = arith.cmpi slt, %6, %7 : vector<1x128xi32>
    %9 = arith.andi %4, %8 : vector<1x128xi1>
    %c-1_i32 = arith.constant -1 : i32
    %10 = vector.broadcast %c-1_i32 : i32 to vector<1x128xi32>
    %11 = arith.addi %0, %10 : vector<1x128xi32>
    %c0_i32_2 = arith.constant 0 : i32
    %12 = vector.broadcast %c0_i32_2 : i32 to vector<1x128xi32>
    %13 = arith.cmpi sge, %11, %12 : vector<1x128xi32>
    %c-1_i32_3 = arith.constant -1 : i32
    %14 = vector.broadcast %c-1_i32_3 : i32 to vector<1x128xi32>
    %15 = arith.addi %0, %14 : vector<1x128xi32>
    %c64_i32_4 = arith.constant 64 : i32
    %16 = vector.broadcast %c64_i32_4 : i32 to vector<1x128xi32>
    %17 = arith.cmpi slt, %15, %16 : vector<1x128xi32>
    %18 = arith.andi %13, %17 : vector<1x128xi1>
    %c1_i32 = arith.constant 1 : i32
    %19 = vector.broadcast %c1_i32 : i32 to vector<1x128xi32>
    %20 = arith.addi %0, %19 : vector<1x128xi32>
    %c0_i32_5 = arith.constant 0 : i32
    %21 = vector.broadcast %c0_i32_5 : i32 to vector<1x128xi32>
    %22 = arith.cmpi sge, %20, %21 : vector<1x128xi32>
    %c1_i32_6 = arith.constant 1 : i32
    %23 = vector.broadcast %c1_i32_6 : i32 to vector<1x128xi32>
    %24 = arith.addi %0, %23 : vector<1x128xi32>
    %c64_i32_7 = arith.constant 64 : i32
    %25 = vector.broadcast %c64_i32_7 : i32 to vector<1x128xi32>
    %26 = arith.cmpi slt, %24, %25 : vector<1x128xi32>
    %27 = arith.andi %22, %26 : vector<1x128xi1>
    %c2_i32 = arith.constant 2 : i32
    %28 = vector.broadcast %c2_i32 : i32 to vector<1x128xi32>
    %29 = arith.addi %0, %28 : vector<1x128xi32>
    %c0_i32_8 = arith.constant 0 : i32
    %30 = vector.broadcast %c0_i32_8 : i32 to vector<1x128xi32>
    %31 = arith.cmpi sge, %29, %30 : vector<1x128xi32>
    %c2_i32_9 = arith.constant 2 : i32
    %32 = vector.broadcast %c2_i32_9 : i32 to vector<1x128xi32>
    %33 = arith.addi %0, %32 : vector<1x128xi32>
    %c64_i32_10 = arith.constant 64 : i32
    %34 = vector.broadcast %c64_i32_10 : i32 to vector<1x128xi32>
    %35 = arith.cmpi slt, %33, %34 : vector<1x128xi32>
    %36 = arith.andi %31, %35 : vector<1x128xi1>
    %c0_11 = arith.constant 0 : index
    %c0_12 = arith.constant 0 : index
    %37 = vector.load %arg0[%c0_11, %c0_12] : memref<8x128xf32, #tpu.memory_space<vmem>>, vector<8x128xf32>
    %c2_i32_13 = arith.constant 2 : i32
    %38 = tpu.dynamic_rotate %37 by %c2_i32_13 dim 1 : vector<8x128xf32>, i32 -> vector<8x128xf32>
    %cst = arith.constant 0.000000e+00 : f32
    %39 = vector.shape_cast %9 : vector<1x128xi1> to vector<1x128xi1>
    %40 = vector.broadcast %39 : vector<1x128xi1> to vector<8x128xi1>
    %41 = vector.broadcast %cst : f32 to vector<8x128xf32>
    %42 = arith.select %40, %38, %41 : vector<8x128xi1>, vector<8x128xf32>
    %c1_i32_14 = arith.constant 1 : i32
    %43 = tpu.dynamic_rotate %37 by %c1_i32_14 dim 1 : vector<8x128xf32>, i32 -> vector<8x128xf32>
    %cst_15 = arith.constant 0.000000e+00 : f32
    %44 = vector.shape_cast %18 : vector<1x128xi1> to vector<1x128xi1>
    %45 = vector.broadcast %44 : vector<1x128xi1> to vector<8x128xi1>
    %46 = vector.broadcast %cst_15 : f32 to vector<8x128xf32>
    %47 = arith.select %45, %43, %46 : vector<8x128xi1>, vector<8x128xf32>
    %c127_i32 = arith.constant 127 : i32
    %48 = tpu.dynamic_rotate %37 by %c127_i32 dim 1 : vector<8x128xf32>, i32 -> vector<8x128xf32>
    %cst_16 = arith.constant 0.000000e+00 : f32
    %49 = vector.shape_cast %27 : vector<1x128xi1> to vector<1x128xi1>
    %50 = vector.broadcast %49 : vector<1x128xi1> to vector<8x128xi1>
    %51 = vector.broadcast %cst_16 : f32 to vector<8x128xf32>
    %52 = arith.select %50, %48, %51 : vector<8x128xi1>, vector<8x128xf32>
    %c126_i32 = arith.constant 126 : i32
    %53 = tpu.dynamic_rotate %37 by %c126_i32 dim 1 : vector<8x128xf32>, i32 -> vector<8x128xf32>
    %cst_17 = arith.constant 0.000000e+00 : f32
    %54 = vector.shape_cast %36 : vector<1x128xi1> to vector<1x128xi1>
    %55 = vector.broadcast %54 : vector<1x128xi1> to vector<8x128xi1>
    %56 = vector.broadcast %cst_17 : f32 to vector<8x128xf32>
    %57 = arith.select %55, %53, %56 : vector<8x128xi1>, vector<8x128xf32>
    %58 = arith.truncf %42 : vector<8x128xf32> to vector<8x128xbf16>
    %c0_18 = arith.constant 0 : index
    %c0_19 = arith.constant 0 : index
    %59 = vector.load %arg6[%c0_18, %c0_19] : memref<48x128xbf16, #tpu.memory_space<vmem>>, vector<8x128xbf16>
    tpu.vector_store %arg6[%c0_18, %c0_19], %58 {strides = array<i32>} : memref<48x128xbf16, #tpu.memory_space<vmem>>, vector<8x128xbf16>,
    %60 = arith.truncf %47 : vector<8x128xf32> to vector<8x128xbf16>
    %c8 = arith.constant 8 : index
    %c0_20 = arith.constant 0 : index
    %61 = vector.load %arg6[%c8, %c0_20] : memref<48x128xbf16, #tpu.memory_space<vmem>>, vector<8x128xbf16>
    tpu.vector_store %arg6[%c8, %c0_20], %60 {strides = array<i32>} : memref<48x128xbf16, #tpu.memory_space<vmem>>, vector<8x128xbf16>,
    %62 = arith.truncf %37 : vector<8x128xf32> to vector<8x128xbf16>
    %c16 = arith.constant 16 : index
    %c0_21 = arith.constant 0 : index
    %63 = vector.load %arg6[%c16, %c0_21] : memref<48x128xbf16, #tpu.memory_space<vmem>>, vector<8x128xbf16>
    tpu.vector_store %arg6[%c16, %c0_21], %62 {strides = array<i32>} : memref<48x128xbf16, #tpu.memory_space<vmem>>, vector<8x128xbf16>,
    %64 = arith.truncf %52 : vector<8x128xf32> to vector<8x128xbf16>
    %c24 = arith.constant 24 : index
    %c0_22 = arith.constant 0 : index
    %65 = vector.load %arg6[%c24, %c0_22] : memref<48x128xbf16, #tpu.memory_space<vmem>>, vector<8x128xbf16>
    tpu.vector_store %arg6[%c24, %c0_22], %64 {strides = array<i32>} : memref<48x128xbf16, #tpu.memory_space<vmem>>, vector<8x128xbf16>,
    %66 = arith.truncf %57 : vector<8x128xf32> to vector<8x128xbf16>
    %c32 = arith.constant 32 : index
    %c0_23 = arith.constant 0 : index
    %67 = vector.load %arg6[%c32, %c0_23] : memref<48x128xbf16, #tpu.memory_space<vmem>>, vector<8x128xbf16>
    tpu.vector_store %arg6[%c32, %c0_23], %66 {strides = array<i32>} : memref<48x128xbf16, #tpu.memory_space<vmem>>, vector<8x128xbf16>,
    %c0_24 = arith.constant 0 : index
    %c0_25 = arith.constant 0 : index
    %68 = vector.load %arg1[%c0_24, %c0_25] : memref<8x40xbf16, #tpu.memory_space<vmem>>, vector<8x40xbf16>
    %c0_26 = arith.constant 0 : index
    %c0_27 = arith.constant 0 : index
    %69 = vector.load %arg6[%c0_26, %c0_27] : memref<48x128xbf16, #tpu.memory_space<vmem>>, vector<40x128xbf16>
    %cst_28 = arith.constant dense<0.000000e+00> : vector<8x128xf32>
    %70 = tpu.matmul %68, %69, %cst_28 {dimension_numbers = #tpu.dot_dimension_numbers<[1], [0], [0], [1], [0, 0, 1, 1], [], []>} : vector<8x40xbf16>, vector<40x128xbf16>, vector<8x128xf32> -> vector<8x128xf32>
    %cst_29 = arith.constant dense<0.000000e+00> : vector<8xf32>
    %71 = vector.multi_reduction <add>, %70, %cst_29 [1] : vector<8x128xf32> to vector<8xf32>
    %72 = vector.shape_cast %71 : vector<8xf32> to vector<8x1xf32>
    %73 = arith.mulf %70, %70 : vector<8x128xf32>
    %cst_30 = arith.constant dense<0.000000e+00> : vector<8xf32>
    %74 = vector.multi_reduction <add>, %73, %cst_30 [1] : vector<8x128xf32> to vector<8xf32>
    %75 = vector.shape_cast %74 : vector<8xf32> to vector<8x1xf32>
    %cst_31 = arith.constant 1.280000e+02 : f32
    %76 = vector.broadcast %cst_31 : f32 to vector<8x1xf32>
    %77 = arith.divf %72, %76 : vector<8x1xf32>
    %cst_32 = arith.constant 1.280000e+02 : f32
    %78 = vector.broadcast %cst_32 : f32 to vector<8x1xf32>
    %79 = arith.divf %75, %78 : vector<8x1xf32>
    %80 = arith.mulf %77, %77 : vector<8x1xf32>
    %81 = arith.subf %79, %80 : vector<8x1xf32>
    %cst_33 = arith.constant 0.000000e+00 : f32
    %82 = vector.broadcast %cst_33 : f32 to vector<8x1xf32>
    %83 = arith.maximumf %81, %82 : vector<8x1xf32>
    %cst_34 = arith.constant 9.99999974E-6 : f32
    %84 = vector.broadcast %cst_34 : f32 to vector<8x1xf32>
    %85 = arith.addf %83, %84 : vector<8x1xf32>
    %86 = math.rsqrt %85 : vector<8x1xf32>
    %87 = vector.broadcast %77 : vector<8x1xf32> to vector<8x128xf32>
    %88 = arith.subf %70, %87 : vector<8x128xf32>
    %89 = vector.broadcast %86 : vector<8x1xf32> to vector<8x128xf32>
    %90 = arith.mulf %88, %89 : vector<8x128xf32>
    %c2_i32_35 = arith.constant 2 : i32
    %91 = tpu.dynamic_rotate %90 by %c2_i32_35 dim 1 : vector<8x128xf32>, i32 -> vector<8x128xf32>
    %cst_36 = arith.constant 0.000000e+00 : f32
    %92 = vector.shape_cast %9 : vector<1x128xi1> to vector<1x128xi1>
    %93 = vector.broadcast %92 : vector<1x128xi1> to vector<8x128xi1>
    %94 = vector.broadcast %cst_36 : f32 to vector<8x128xf32>
    %95 = arith.select %93, %91, %94 : vector<8x128xi1>, vector<8x128xf32>
    %c1_i32_37 = arith.constant 1 : i32
    %96 = tpu.dynamic_rotate %90 by %c1_i32_37 dim 1 : vector<8x128xf32>, i32 -> vector<8x128xf32>
    %cst_38 = arith.constant 0.000000e+00 : f32
    %97 = vector.shape_cast %18 : vector<1x128xi1> to vector<1x128xi1>
    %98 = vector.broadcast %97 : vector<1x128xi1> to vector<8x128xi1>
    %99 = vector.broadcast %cst_38 : f32 to vector<8x128xf32>
    %100 = arith.select %98, %96, %99 : vector<8x128xi1>, vector<8x128xf32>
    %c127_i32_39 = arith.constant 127 : i32
    %101 = tpu.dynamic_rotate %90 by %c127_i32_39 dim 1 : vector<8x128xf32>, i32 -> vector<8x128xf32>
    %cst_40 = arith.constant 0.000000e+00 : f32
    %102 = vector.shape_cast %27 : vector<1x128xi1> to vector<1x128xi1>
    %103 = vector.broadcast %102 : vector<1x128xi1> to vector<8x128xi1>
    %104 = vector.broadcast %cst_40 : f32 to vector<8x128xf32>
    %105 = arith.select %103, %101, %104 : vector<8x128xi1>, vector<8x128xf32>
    %c126_i32_41 = arith.constant 126 : i32
    %106 = tpu.dynamic_rotate %90 by %c126_i32_41 dim 1 : vector<8x128xf32>, i32 -> vector<8x128xf32>
    %cst_42 = arith.constant 0.000000e+00 : f32
    %107 = vector.shape_cast %36 : vector<1x128xi1> to vector<1x128xi1>
    %108 = vector.broadcast %107 : vector<1x128xi1> to vector<8x128xi1>
    %109 = vector.broadcast %cst_42 : f32 to vector<8x128xf32>
    %110 = arith.select %108, %106, %109 : vector<8x128xi1>, vector<8x128xf32>
    %111 = arith.truncf %95 : vector<8x128xf32> to vector<8x128xbf16>
    %c0_43 = arith.constant 0 : index
    %c0_44 = arith.constant 0 : index
    %112 = vector.load %arg6[%c0_43, %c0_44] : memref<48x128xbf16, #tpu.memory_space<vmem>>, vector<8x128xbf16>
    tpu.vector_store %arg6[%c0_43, %c0_44], %111 {strides = array<i32>} : memref<48x128xbf16, #tpu.memory_space<vmem>>, vector<8x128xbf16>,
    %113 = arith.truncf %100 : vector<8x128xf32> to vector<8x128xbf16>
    %c8_45 = arith.constant 8 : index
    %c0_46 = arith.constant 0 : index
    %114 = vector.load %arg6[%c8_45, %c0_46] : memref<48x128xbf16, #tpu.memory_space<vmem>>, vector<8x128xbf16>
    tpu.vector_store %arg6[%c8_45, %c0_46], %113 {strides = array<i32>} : memref<48x128xbf16, #tpu.memory_space<vmem>>, vector<8x128xbf16>,
    %115 = arith.truncf %90 : vector<8x128xf32> to vector<8x128xbf16>
    %c16_47 = arith.constant 16 : index
    %c0_48 = arith.constant 0 : index
    %116 = vector.load %arg6[%c16_47, %c0_48] : memref<48x128xbf16, #tpu.memory_space<vmem>>, vector<8x128xbf16>
    tpu.vector_store %arg6[%c16_47, %c0_48], %115 {strides = array<i32>} : memref<48x128xbf16, #tpu.memory_space<vmem>>, vector<8x128xbf16>,
    %117 = arith.truncf %105 : vector<8x128xf32> to vector<8x128xbf16>
    %c24_49 = arith.constant 24 : index
    %c0_50 = arith.constant 0 : index
    %118 = vector.load %arg6[%c24_49, %c0_50] : memref<48x128xbf16, #tpu.memory_space<vmem>>, vector<8x128xbf16>
    tpu.vector_store %arg6[%c24_49, %c0_50], %117 {strides = array<i32>} : memref<48x128xbf16, #tpu.memory_space<vmem>>, vector<8x128xbf16>,
    %119 = arith.truncf %110 : vector<8x128xf32> to vector<8x128xbf16>
    %c32_51 = arith.constant 32 : index
    %c0_52 = arith.constant 0 : index
    %120 = vector.load %arg6[%c32_51, %c0_52] : memref<48x128xbf16, #tpu.memory_space<vmem>>, vector<8x128xbf16>
    tpu.vector_store %arg6[%c32_51, %c0_52], %119 {strides = array<i32>} : memref<48x128xbf16, #tpu.memory_space<vmem>>, vector<8x128xbf16>,
    %c0_53 = arith.constant 0 : index
    %c0_54 = arith.constant 0 : index
    %121 = vector.load %arg2[%c0_53, %c0_54] : memref<8x40xbf16, #tpu.memory_space<vmem>>, vector<8x40xbf16>
    %c0_55 = arith.constant 0 : index
    %c0_56 = arith.constant 0 : index
    %122 = vector.load %arg6[%c0_55, %c0_56] : memref<48x128xbf16, #tpu.memory_space<vmem>>, vector<40x128xbf16>
    %cst_57 = arith.constant dense<0.000000e+00> : vector<8x128xf32>
    %123 = tpu.matmul %121, %122, %cst_57 {dimension_numbers = #tpu.dot_dimension_numbers<[1], [0], [0], [1], [0, 0, 1, 1], [], []>} : vector<8x40xbf16>, vector<40x128xbf16>, vector<8x128xf32> -> vector<8x128xf32>
    %cst_58 = arith.constant dense<0.000000e+00> : vector<8xf32>
    %124 = vector.multi_reduction <add>, %123, %cst_58 [1] : vector<8x128xf32> to vector<8xf32>
    %125 = vector.shape_cast %124 : vector<8xf32> to vector<8x1xf32>
    %126 = arith.mulf %123, %123 : vector<8x128xf32>
    %cst_59 = arith.constant dense<0.000000e+00> : vector<8xf32>
    %127 = vector.multi_reduction <add>, %126, %cst_59 [1] : vector<8x128xf32> to vector<8xf32>
    %128 = vector.shape_cast %127 : vector<8xf32> to vector<8x1xf32>
    %cst_60 = arith.constant 1.280000e+02 : f32
    %129 = vector.broadcast %cst_60 : f32 to vector<8x1xf32>
    %130 = arith.divf %125, %129 : vector<8x1xf32>
    %cst_61 = arith.constant 1.280000e+02 : f32
    %131 = vector.broadcast %cst_61 : f32 to vector<8x1xf32>
    %132 = arith.divf %128, %131 : vector<8x1xf32>
    %133 = arith.mulf %130, %130 : vector<8x1xf32>
    %134 = arith.subf %132, %133 : vector<8x1xf32>
    %cst_62 = arith.constant 0.000000e+00 : f32
    %135 = vector.broadcast %cst_62 : f32 to vector<8x1xf32>
    %136 = arith.maximumf %134, %135 : vector<8x1xf32>
    %cst_63 = arith.constant 9.99999974E-6 : f32
    %137 = vector.broadcast %cst_63 : f32 to vector<8x1xf32>
    %138 = arith.addf %136, %137 : vector<8x1xf32>
    %139 = math.rsqrt %138 : vector<8x1xf32>
    %140 = vector.broadcast %130 : vector<8x1xf32> to vector<8x128xf32>
    %141 = arith.subf %123, %140 : vector<8x128xf32>
    %142 = vector.broadcast %139 : vector<8x1xf32> to vector<8x128xf32>
    %143 = arith.mulf %141, %142 : vector<8x128xf32>
    %cst_64 = arith.constant 7.500000e-01 : f32
    %144 = vector.broadcast %cst_64 : f32 to vector<8x128xf32>
    %145 = arith.mulf %144, %143 : vector<8x128xf32>
    %c1_i32_65 = arith.constant 1 : i32
    %146 = tpu.dynamic_rotate %143 by %c1_i32_65 dim 1 : vector<8x128xf32>, i32 -> vector<8x128xf32>
    %147 = vector.shape_cast %18 : vector<1x128xi1> to vector<1x128xi1>
    %148 = vector.broadcast %147 : vector<1x128xi1> to vector<8x128xi1>
    %149 = arith.select %148, %146, %143 : vector<8x128xi1>, vector<8x128xf32>
    %cst_66 = arith.constant 2.500000e-01 : f32
    %150 = vector.broadcast %cst_66 : f32 to vector<8x128xf32>
    %151 = arith.mulf %150, %149 : vector<8x128xf32>
    %152 = arith.addf %145, %151 : vector<8x128xf32>
    %cst_67 = arith.constant 7.500000e-01 : f32
    %153 = vector.broadcast %cst_67 : f32 to vector<8x128xf32>
    %154 = arith.mulf %153, %143 : vector<8x128xf32>
    %c127_i32_68 = arith.constant 127 : i32
    %155 = tpu.dynamic_rotate %143 by %c127_i32_68 dim 1 : vector<8x128xf32>, i32 -> vector<8x128xf32>
    %156 = vector.shape_cast %27 : vector<1x128xi1> to vector<1x128xi1>
    %157 = vector.broadcast %156 : vector<1x128xi1> to vector<8x128xi1>
    %158 = arith.select %157, %155, %143 : vector<8x128xi1>, vector<8x128xf32>
    %cst_69 = arith.constant 2.500000e-01 : f32
    %159 = vector.broadcast %cst_69 : f32 to vector<8x128xf32>
    %160 = arith.mulf %159, %158 : vector<8x128xf32>
    %161 = arith.addf %154, %160 : vector<8x128xf32>
    %c1_i32_70 = arith.constant 1 : i32
    %162 = tpu.dynamic_rotate %152 by %c1_i32_70 dim 1 : vector<8x128xf32>, i32 -> vector<8x128xf32>
    %cst_71 = arith.constant 0.000000e+00 : f32
    %163 = vector.shape_cast %18 : vector<1x128xi1> to vector<1x128xi1>
    %164 = vector.broadcast %163 : vector<1x128xi1> to vector<8x128xi1>
    %165 = vector.broadcast %cst_71 : f32 to vector<8x128xf32>
    %166 = arith.select %164, %162, %165 : vector<8x128xi1>, vector<8x128xf32>
    %c1_i32_72 = arith.constant 1 : i32
    %167 = tpu.dynamic_rotate %161 by %c1_i32_72 dim 1 : vector<8x128xf32>, i32 -> vector<8x128xf32>
    %cst_73 = arith.constant 0.000000e+00 : f32
    %168 = vector.shape_cast %18 : vector<1x128xi1> to vector<1x128xi1>
    %169 = vector.broadcast %168 : vector<1x128xi1> to vector<8x128xi1>
    %170 = vector.broadcast %cst_73 : f32 to vector<8x128xf32>
    %171 = arith.select %169, %167, %170 : vector<8x128xi1>, vector<8x128xf32>
    %c127_i32_74 = arith.constant 127 : i32
    %172 = tpu.dynamic_rotate %152 by %c127_i32_74 dim 1 : vector<8x128xf32>, i32 -> vector<8x128xf32>
    %cst_75 = arith.constant 0.000000e+00 : f32
    %173 = vector.shape_cast %27 : vector<1x128xi1> to vector<1x128xi1>
    %174 = vector.broadcast %173 : vector<1x128xi1> to vector<8x128xi1>
    %175 = vector.broadcast %cst_75 : f32 to vector<8x128xf32>
    %176 = arith.select %174, %172, %175 : vector<8x128xi1>, vector<8x128xf32>
    %c127_i32_76 = arith.constant 127 : i32
    %177 = tpu.dynamic_rotate %161 by %c127_i32_76 dim 1 : vector<8x128xf32>, i32 -> vector<8x128xf32>
    %cst_77 = arith.constant 0.000000e+00 : f32
    %178 = vector.shape_cast %27 : vector<1x128xi1> to vector<1x128xi1>
    %179 = vector.broadcast %178 : vector<1x128xi1> to vector<8x128xi1>
    %180 = vector.broadcast %cst_77 : f32 to vector<8x128xf32>
    %181 = arith.select %179, %177, %180 : vector<8x128xi1>, vector<8x128xf32>
    %182 = arith.truncf %166 : vector<8x128xf32> to vector<8x128xbf16>
    %c0_78 = arith.constant 0 : index
    %c0_79 = arith.constant 0 : index
    %183 = vector.load %arg6[%c0_78, %c0_79] : memref<48x128xbf16, #tpu.memory_space<vmem>>, vector<8x128xbf16>
    tpu.vector_store %arg6[%c0_78, %c0_79], %182 {strides = array<i32>} : memref<48x128xbf16, #tpu.memory_space<vmem>>, vector<8x128xbf16>,
    %184 = arith.truncf %171 : vector<8x128xf32> to vector<8x128xbf16>
    %c8_80 = arith.constant 8 : index
    %c0_81 = arith.constant 0 : index
    %185 = vector.load %arg6[%c8_80, %c0_81] : memref<48x128xbf16, #tpu.memory_space<vmem>>, vector<8x128xbf16>
    tpu.vector_store %arg6[%c8_80, %c0_81], %184 {strides = array<i32>} : memref<48x128xbf16, #tpu.memory_space<vmem>>, vector<8x128xbf16>,
    %186 = arith.truncf %152 : vector<8x128xf32> to vector<8x128xbf16>
    %c16_82 = arith.constant 16 : index
    %c0_83 = arith.constant 0 : index
    %187 = vector.load %arg6[%c16_82, %c0_83] : memref<48x128xbf16, #tpu.memory_space<vmem>>, vector<8x128xbf16>
    tpu.vector_store %arg6[%c16_82, %c0_83], %186 {strides = array<i32>} : memref<48x128xbf16, #tpu.memory_space<vmem>>, vector<8x128xbf16>,
    %188 = arith.truncf %161 : vector<8x128xf32> to vector<8x128xbf16>
    %c24_84 = arith.constant 24 : index
    %c0_85 = arith.constant 0 : index
    %189 = vector.load %arg6[%c24_84, %c0_85] : memref<48x128xbf16, #tpu.memory_space<vmem>>, vector<8x128xbf16>
    tpu.vector_store %arg6[%c24_84, %c0_85], %188 {strides = array<i32>} : memref<48x128xbf16, #tpu.memory_space<vmem>>, vector<8x128xbf16>,
    %190 = arith.truncf %176 : vector<8x128xf32> to vector<8x128xbf16>
    %c32_86 = arith.constant 32 : index
    %c0_87 = arith.constant 0 : index
    %191 = vector.load %arg6[%c32_86, %c0_87] : memref<48x128xbf16, #tpu.memory_space<vmem>>, vector<8x128xbf16>
    tpu.vector_store %arg6[%c32_86, %c0_87], %190 {strides = array<i32>} : memref<48x128xbf16, #tpu.memory_space<vmem>>, vector<8x128xbf16>,
    %192 = arith.truncf %181 : vector<8x128xf32> to vector<8x128xbf16>
    %c40 = arith.constant 40 : index
    %c0_88 = arith.constant 0 : index
    %193 = vector.load %arg6[%c40, %c0_88] : memref<48x128xbf16, #tpu.memory_space<vmem>>, vector<8x128xbf16>
    tpu.vector_store %arg6[%c40, %c0_88], %192 {strides = array<i32>} : memref<48x128xbf16, #tpu.memory_space<vmem>>, vector<8x128xbf16>,
    %c0_89 = arith.constant 0 : index
    %c0_90 = arith.constant 0 : index
    %194 = vector.load %arg3[%c0_89, %c0_90] : memref<16x48xbf16, #tpu.memory_space<vmem>>, vector<16x48xbf16>
    %c0_91 = arith.constant 0 : index
    %c0_92 = arith.constant 0 : index
    %195 = vector.load %arg6[%c0_91, %c0_92] : memref<48x128xbf16, #tpu.memory_space<vmem>>, vector<48x128xbf16>
    %cst_93 = arith.constant dense<0.000000e+00> : vector<16x128xf32>
    %196 = tpu.matmul %194, %195, %cst_93 {dimension_numbers = #tpu.dot_dimension_numbers<[1], [0], [0], [1], [0, 0, 1, 1], [], []>} : vector<16x48xbf16>, vector<48x128xbf16>, vector<16x128xf32> -> vector<16x128xf32>
    %cst_94 = arith.constant dense<0.000000e+00> : vector<16xf32>
    %197 = vector.multi_reduction <add>, %196, %cst_94 [1] : vector<16x128xf32> to vector<16xf32>
    %198 = vector.shape_cast %197 : vector<16xf32> to vector<16x1xf32>
    %199 = arith.mulf %196, %196 : vector<16x128xf32>
    %cst_95 = arith.constant dense<0.000000e+00> : vector<16xf32>
    %200 = vector.multi_reduction <add>, %199, %cst_95 [1] : vector<16x128xf32> to vector<16xf32>
    %201 = vector.shape_cast %200 : vector<16xf32> to vector<16x1xf32>
    %202 = vector.extract_strided_slice %198 {offsets = [0, 0], sizes = [8, 1], strides = [1, 1]} : vector<16x1xf32> to vector<8x1xf32>
    %203 = vector.extract_strided_slice %198 {offsets = [8, 0], sizes = [8, 1], strides = [1, 1]} : vector<16x1xf32> to vector<8x1xf32>
    %204 = arith.addf %202, %203 : vector<8x1xf32>
    %205 = vector.extract_strided_slice %201 {offsets = [0, 0], sizes = [8, 1], strides = [1, 1]} : vector<16x1xf32> to vector<8x1xf32>
    %206 = vector.extract_strided_slice %201 {offsets = [8, 0], sizes = [8, 1], strides = [1, 1]} : vector<16x1xf32> to vector<8x1xf32>
    %207 = arith.addf %205, %206 : vector<8x1xf32>
    %cst_96 = arith.constant 2.560000e+02 : f32
    %208 = vector.broadcast %cst_96 : f32 to vector<8x1xf32>
    %209 = arith.divf %204, %208 : vector<8x1xf32>
    %cst_97 = arith.constant 2.560000e+02 : f32
    %210 = vector.broadcast %cst_97 : f32 to vector<8x1xf32>
    %211 = arith.divf %207, %210 : vector<8x1xf32>
    %212 = arith.mulf %209, %209 : vector<8x1xf32>
    %213 = arith.subf %211, %212 : vector<8x1xf32>
    %cst_98 = arith.constant 0.000000e+00 : f32
    %214 = vector.broadcast %cst_98 : f32 to vector<8x1xf32>
    %215 = arith.maximumf %213, %214 : vector<8x1xf32>
    %cst_99 = arith.constant 9.99999974E-6 : f32
    %216 = vector.broadcast %cst_99 : f32 to vector<8x1xf32>
    %217 = arith.addf %215, %216 : vector<8x1xf32>
    %218 = math.rsqrt %217 : vector<8x1xf32>
    %219 = tpu.concatenate %209, %209 in 0 : vector<8x1xf32>, vector<8x1xf32> -> vector<16x1xf32>
    %220 = tpu.concatenate %218, %218 in 0 : vector<8x1xf32>, vector<8x1xf32> -> vector<16x1xf32>
    %221 = vector.broadcast %219 : vector<16x1xf32> to vector<16x128xf32>
    %222 = arith.subf %196, %221 : vector<16x128xf32>
    %223 = vector.broadcast %220 : vector<16x1xf32> to vector<16x128xf32>
    %224 = arith.mulf %222, %223 : vector<16x128xf32>
    %cst_100 = arith.constant 0.000000e+00 : f32
    %225 = vector.broadcast %cst_100 : f32 to vector<16x128xf32>
    %226 = arith.cmpf oge, %224, %225 : vector<16x128xf32>
    %cst_101 = arith.constant 0.00999999977 : f32
    %227 = vector.broadcast %cst_101 : f32 to vector<16x128xf32>
    %228 = arith.mulf %227, %224 : vector<16x128xf32>
    %229 = arith.select %226, %224, %228 : vector<16x128xi1>, vector<16x128xf32>
    %c0_102 = arith.constant 0 : index
    %c0_103 = arith.constant 0 : index
    %230 = vector.load %arg5[%c0_102, %c0_103] : memref<16x128xf32, #tpu.memory_space<vmem>>, vector<16x128xf32>
    tpu.vector_store %arg5[%c0_102, %c0_103], %229 {strides = array<i32>} : memref<16x128xf32, #tpu.memory_space<vmem>>, vector<16x128xf32>,
    return
  }
}

</mosaic_0001>

<llo_original>
// kernel: tpu_custom_call.1
$region0: #{tpu_custom_call.1}
  #allocation0 [shape = 'u32[]', space=smem, size = 0x4, offset = 0x4, fixed_abs, tag = 'smem constant byte address 0x4 - core index']
  #allocation1 [shape = 'u32[144,128]{1,0:T(1,128)}', space=vmem, size = 0x12000, scoped, tag = 'internal scratch']
  #allocation2 [shape = 'bf16[48,128]{1,0:T(8,128)(2,1)}', space=vmem, size = 0x3000, scoped, tag = 'scratch operand']
  %s0 = inlined_call_operand.hbm [shape: f32[8,128], index: 0, kind: input, shape index: {}]
  %s1 = inlined_call_operand.hbm [shape: bf16[8,40], index: 1, kind: input, shape index: {}]
  %s2 = inlined_call_operand.hbm [shape: bf16[8,40], index: 2, kind: input, shape index: {}]
  %s3 = inlined_call_operand.hbm [shape: bf16[16,48], index: 3, kind: input, shape index: {}]
  %s4 = inlined_call_operand.vmem [shape: s32[1,128], index: 4, kind: input, shape index: {}]
  %s5 = inlined_call_operand.hbm [shape: f32[16,128], index: 5, kind: output, shape index: {}]
  %s6 = sld [smem:[#allocation0]]
  $region46: #{tpu_custom_call.1} parent=0
    _
  %s8 = ssub.s32 1, %s6
  %s9 = scalar_select 0, %s8, %s6
  $region1: #{tpu_custom_call.1} parent=0
    #allocation3 [shape = 'u8[4096]{0}', space=vmem, size = 0x1000, scoped, tag = 'input window, operand 0, single buffered']
    #allocation4 [shape = 's32[1]{0}', space=sflag, size = 0x4, scoped, tag = 'scoped memory for tpu_custom_call.1']
    #allocation5 [shape = 's32[1]{0}', space=sflag, size = 0x4, scoped, tag = 'scoped memory for tpu_custom_call.1']
    #allocation6 [shape = 'u8[2048]{0}', space=vmem, size = 0x800, scoped, tag = 'input window, operand 1, single buffered']
    #allocation7 [shape = 's32[1]{0}', space=sflag, size = 0x4, scoped, tag = 'scoped memory for tpu_custom_call.1']
    #allocation8 [shape = 'u8[2048]{0}', space=vmem, size = 0x800, scoped, tag = 'input window, operand 2, single buffered']
    #allocation9 [shape = 'u8[4096]{0}', space=vmem, size = 0x1000, scoped, tag = 'input window, operand 3, single buffered']
    #allocation10 [shape = 's32[1]{0}', space=sflag, size = 0x4, scoped, tag = 'scoped memory for tpu_custom_call.1']
    #allocation11 [shape = 'u8[8192]{0}', space=vmem, size = 0x2000, scoped, tag = 'output window, operand 0, single buffered']
    %10 = vsyncpa [#allocation4], 0
    %11 = vsyncpa [#allocation7], 0
    %12 = vsyncpa [#allocation10], 0
    %13 = vsyncpa [#allocation5], 0
    // Predicated region
    $region2: #{tpu_custom_call.1} parent=1 // pred_check
      _
    $region3: #{tpu_custom_call.1} parent=1 // pred_check_branch
      %15 = sbr.rel (0) target = $region5
    $region4: #{tpu_custom_call.1} parent=1 // pred_region
      %s17 = ssub.s32 128, 128
      %18 = vsyncadd [#allocation4], %s17
      %s20 = sshll.u32 [#allocation3], 4
      %s21 = int_to_ptr.vmem [resolvable:$true] %s20
      %23 = dma.hbm_to_vmem [thread:$0]  %s0, 128, %s21, [#allocation4]
    $region5: #{tpu_custom_call.1} parent=1 // pred_fallthru
      _
    // Predicated region
    $region6: #{tpu_custom_call.1} parent=1 // pred_check
      _
    $region7: #{tpu_custom_call.1} parent=1 // pred_check_branch
      %25 = sbr.rel (0) target = $region9
    $region8: #{tpu_custom_call.1} parent=1 // pred_region
      %s27 = ssub.s32 64, 64
      %28 = vsyncadd [#allocation7], %s27
      %s30 = sshll.u32 [#allocation6], 4
      %s31 = int_to_ptr.vmem [resolvable:$true] %s30
      %33 = dma.hbm_to_vmem [thread:$0]  %s1, 64, %s31, [#allocation7]
    $region9: #{tpu_custom_call.1} parent=1 // pred_fallthru
      _
    // Predicated region
    $region10: #{tpu_custom_call.1} parent=1 // pred_check
      _
    $region11: #{tpu_custom_call.1} parent=1 // pred_check_branch
      %35 = sbr.rel (0) target = $region13
    $region12: #{tpu_custom_call.1} parent=1 // pred_region
      %s37 = ssub.s32 64, 64
      %38 = vsyncadd [#allocation7], %s37
      %s40 = sshll.u32 [#allocation8], 4
      %s41 = int_to_ptr.vmem [resolvable:$true] %s40
      %43 = dma.hbm_to_vmem [thread:$0]  %s2, 64, %s41, [#allocation7]
    $region13: #{tpu_custom_call.1} parent=1 // pred_fallthru
      _
    // Predicated region
    $region14: #{tpu_custom_call.1} parent=1 // pred_check
      _
    $region15: #{tpu_custom_call.1} parent=1 // pred_check_branch
      %45 = sbr.rel (0) target = $region17
    $region16: #{tpu_custom_call.1} parent=1 // pred_region
      %s47 = ssub.s32 128, 128
      %48 = vsyncadd [#allocation10], %s47
      %s49 = sshll.u32 [#allocation9], 4
      %s50 = int_to_ptr.vmem [resolvable:$true] %s49
      %55 = dma.hbm_to_vmem [thread:$0]  %s3, 128, %s50, [#allocation10], 64, 64, 4
    $region17: #{tpu_custom_call.1} parent=1 // pred_fallthru
      _
    // Predicated region
    $region18: #{tpu_custom_call.1} parent=1 // pred_check
      _
    $region19: #{tpu_custom_call.1} parent=1 // pred_check_branch
      %57 = sbr.rel (0) target = $region21
    $region20: #{tpu_custom_call.1} parent=1 // pred_region
      _
    $region21: #{tpu_custom_call.1} parent=1 // pred_fallthru
      _
    // Predicated region
    $region22: #{tpu_custom_call.1} parent=1 // pred_check
      _
    $region23: #{tpu_custom_call.1} parent=1 // pred_check_branch
      %59 = sbr.rel (0) target = $region25
    $region24: #{tpu_custom_call.1} parent=1 // pred_region
      %60 = dma.done [#allocation4], 128
    $region25: #{tpu_custom_call.1} parent=1 // pred_fallthru
      _
    // Predicated region
    $region26: #{tpu_custom_call.1} parent=1 // pred_check
      _
    $region27: #{tpu_custom_call.1} parent=1 // pred_check_branch
      %62 = sbr.rel (0) target = $region29
    $region28: #{tpu_custom_call.1} parent=1 // pred_region
      %63 = dma.done [#allocation7], 64
    $region29: #{tpu_custom_call.1} parent=1 // pred_fallthru
      _
    // Predicated region
    $region30: #{tpu_custom_call.1} parent=1 // pred_check
      _
    $region31: #{tpu_custom_call.1} parent=1 // pred_check_branch
      %65 = sbr.rel (0) target = $region33
    $region32: #{tpu_custom_call.1} parent=1 // pred_region
      %66 = dma.done [#allocation7], 64
    $region33: #{tpu_custom_call.1} parent=1 // pred_fallthru
      _
    // Predicated region
    $region34: #{tpu_custom_call.1} parent=1 // pred_check
      _
    $region35: #{tpu_custom_call.1} parent=1 // pred_check_branch
      %68 = sbr.rel (0) target = $region37
    $region36: #{tpu_custom_call.1} parent=1 // pred_region
      %69 = dma.done [#allocation10], 128
    $region37: #{tpu_custom_call.1} parent=1 // pred_fallthru
      _
    %v71 = vld [vmem:[%s4] sm:$0x1]
    %v72 = vadd.s32 %v71, 4294967294
    %vm73 = vcmp.ge.s32.totalorder %v72, 0
    %vm74 = vcmp.lt.s32.totalorder %v72, 64
    %vm75 = vmand %vm73, %vm74
    %v76 = vadd.s32 %v71, 4294967295
    %vm77 = vcmp.ge.s32.totalorder %v76, 0
    %vm78 = vcmp.lt.s32.totalorder %v76, 64
    %vm79 = vmand %vm77, %vm78
    %v80 = vadd.s32 %v71, 1
    %vm81 = vcmp.ge.s32.totalorder %v80, 0
    %vm82 = vcmp.lt.s32.totalorder %v80, 64
    %vm83 = vmand %vm81, %vm82
    %v84 = vadd.s32 %v71, 2
    %vm85 = vcmp.ge.s32.totalorder %v84, 0
    %vm86 = vcmp.lt.s32.totalorder %v84, 64
    %vm87 = vmand %vm85, %vm86
    %v88 = vld [vmem:[#allocation3] sm:$0xff]
    %89 = vrot.lane.b32.xlu0 %v88, 2
    %v90 = vpop.permute.xlu0 %89
    %v91 = vsel %vm75, 1, 0
    %v92 = vlaneseq
    %v93 = vshrl.u32 %v92, 7
    %v94 = vsub.s32 0, %v93
    %v95 = vrot.slane %v91, %v94
    %vm96 = vcmp.eq.s32.totalorder %v95, 1
    %v97 = vsel %vm96, %v90, 0.0
    %98 = vrot.lane.b32.xlu0 %v88, 1
    %v99 = vpop.permute.xlu0 %98
    %v100 = vsel %vm79, 1, 0
    %v101 = vlaneseq
    %v102 = vshrl.u32 %v101, 7
    %v103 = vsub.s32 0, %v102
    %v104 = vrot.slane %v100, %v103
    %vm105 = vcmp.eq.s32.totalorder %v104, 1
    %v106 = vsel %vm105, %v99, 0.0
    %107 = vrot.lane.b32.xlu0 %v88, 127
    %v108 = vpop.permute.xlu0 %107
    %v109 = vsel %vm83, 1, 0
    %v110 = vlaneseq
    %v111 = vshrl.u32 %v110, 7
    %v112 = vsub.s32 0, %v111
    %v113 = vrot.slane %v109, %v112
    %vm114 = vcmp.eq.s32.totalorder %v113, 1
    %v115 = vsel %vm114, %v108, 0.0
    %116 = vrot.lane.b32.xlu0 %v88, 126
    %v117 = vpop.permute.xlu0 %116
    %v118 = vsel %vm87, 1, 0
    %v119 = vlaneseq
    %v120 = vshrl.u32 %v119, 7
    %v121 = vsub.s32 0, %v120
    %v122 = vrot.slane %v118, %v121
    %vm123 = vcmp.eq.s32.totalorder %v122, 1
    %v124 = vsel %vm123, %v117, 0.0
    %v125 = vpack.c.bf16 %v97, %v97
    %126 = vst [vmem:[#allocation2] sm:$0xf] %v125
    %v127 = vpack.c.bf16 %v106, %v106
    %128 = vst [vmem:[#allocation2 + $0x4] sm:$0xf] %v127
    %v129 = vpack.c.bf16 %v88, %v88
    %130 = vst [vmem:[#allocation2 + $0x8] sm:$0xf] %v129
    %v131 = vpack.c.bf16 %v115, %v115
    %132 = vst [vmem:[#allocation2 + $0xc] sm:$0xf] %v131
    %v133 = vpack.c.bf16 %v124, %v124
    %134 = vst [vmem:[#allocation2 + $0x10] sm:$0xf] %v133
    %v135 = vld [vmem:[#allocation6] sm:$0xf]
    %v136 = vld [vmem:[#allocation2] sm:$0xf]
    %v137 = vld [vmem:[#allocation2 + $0x4] sm:$0xf]
    %v138 = vld [vmem:[#allocation2 + $0x8] sm:$0xf]
    %v139 = vld [vmem:[#allocation2 + $0xc] sm:$0xf]
    %v140 = vld [vmem:[#allocation2 + $0x10] sm:$0xf]
    %v146 = vunpack.c.l.b16 %v136
    %v147 = vunpack.c.l.b16 %v137
    %v148 = vunpack.c.l.b16 %v138
    %v149 = vunpack.c.l.b16 %v139
    %v150 = vunpack.c.l.b16 %v140
    %v151 = vpack.c.b16 %v147, %v146
    %v152 = vpack.c.b16 %v149, %v148
    %v153 = vpack.c.b16 %v150, %v150
    %vm156 = vcmask 326656
    %v158 = vsel %vm156, %v135, 0
    %vm160 = vcmask 1043456
    %v162 = vsel %vm160, %v153, 0
    %164 = vmatprep.subr.bf16.mxu0 0
    %165 = vmatpush1.bf16.msra.mxu0 0
    %166 = vmatprep.subr.bf16.mxu0 0
    %167 = vmatpush1.bf16.msra.mxu0 0
    %168 = vmatprep.subr.bf16.mxu0 0
    %169 = vmatpush1.bf16.msra.mxu0 0
    %170 = vmatprep.subr.bf16.mxu0 0
    %171 = vmatpush1.bf16.msra.mxu0 0
    %172 = vmatprep.subr.bf16.mxu0 0
    %173 = vmatpush1.bf16.msra.mxu0 0
    %174 = vmatprep.subr.bf16.mxu0 0
    %175 = vmatpush1.bf16.msra.mxu0 %v162
    %176 = vmatprep.subr.bf16.mxu0 0
    %177 = vmatpush1.bf16.msra.mxu0 %v152
    %178 = vmatprep.subr.bf16.mxu0 0
    %179 = vmatpush1.bf16.msra.mxu0 %v151
    %180 = vmatprep.subr.bf16.mxu0 0
    %181 = vmatpush2.bf16.msra.mxu0 0
    %182 = vmatprep.subr.bf16.mxu0 0
    %183 = vmatpush2.bf16.msra.mxu0 0
    %184 = vmatprep.subr.bf16.mxu0 0
    %185 = vmatpush2.bf16.msra.mxu0 0
    %186 = vmatprep.subr.bf16.mxu0 0
    %187 = vmatpush2.bf16.msra.mxu0 0
    %188 = vmatprep.subr.bf16.mxu0 0
    %189 = vmatpush2.bf16.msra.mxu0 0
    %190 = vmatprep.subr.bf16.mxu0 0
    %191 = vmatpush2.bf16.msra.mxu0 0
    %192 = vmatprep.subr.bf16.mxu0 0
    %193 = vmatpush2.bf16.msra.mxu0 0
    %194 = vmatprep.subr.bf16.mxu0 0
    %195 = vmatpush2.bf16.msra.mxu0 0
    %196 = vmatprep.mubr.bf16.mxu0 0
    %197 = vmatmul.mubr.bf16.gmra.mxu0 %v158
    %v198 = vpop.f32.mrf.mxu0
    %v199 = vadd.f32 0.0, %v198
    %v200 = vpop.f32.mrf.mxu0
    %v201 = vpop.f32.mrf.mxu0
    %v202 = vpop.f32.mrf.mxu0
    %203 = vdwg.mxu0
    %204 = vadd.xlane.f32.xlu0 %v199
    %v205 = vpop.xlane.xlu0 %204
    %v206 = vmul.f32 %v199, %v199
    %207 = vadd.xlane.f32.xlu0 %v206
    %v208 = vpop.xlane.xlu0 %207
    %v209 = vrcp.pop 128.0
    %v210 = vmul.f32 %v205, %v209
    %v211 = vmul.f32 %v208, %v209
    %v212 = vmul.f32 %v210, %v210
    %v213 = vsub.f32 %v211, %v212
    %v214 = vmax.f32 %v213, 0.0
    %v215 = vadd.f32 %v214, 1e-05
    %v216 = vrsqrt.pop %v215
    %v217 = vsub.f32 %v199, %v210
    %v218 = vmul.f32 %v217, %v216
    %219 = vrot.lane.b32.xlu0 %v218, 2
    %v220 = vpop.permute.xlu0 %219
    %v221 = vsel %vm96, %v220, 0.0
    %222 = vrot.lane.b32.xlu0 %v218, 1
    %v223 = vpop.permute.xlu0 %222
    %v224 = vsel %vm105, %v223, 0.0
    %225 = vrot.lane.b32.xlu0 %v218, 127
    %v226 = vpop.permute.xlu0 %225
    %v227 = vsel %vm114, %v226, 0.0
    %228 = vrot.lane.b32.xlu0 %v218, 126
    %v229 = vpop.permute.xlu0 %228
    %v230 = vsel %vm123, %v229, 0.0
    %v231 = vpack.c.bf16 %v221, %v221
    %232 = vst [vmem:[#allocation2] sm:$0xf] %v231
    %v233 = vpack.c.bf16 %v224, %v224
    %234 = vst [vmem:[#allocation2 + $0x4] sm:$0xf] %v233
    %v235 = vpack.c.bf16 %v218, %v218
    %236 = vst [vmem:[#allocation2 + $0x8] sm:$0xf] %v235
    %v237 = vpack.c.bf16 %v227, %v227
    %238 = vst [vmem:[#allocation2 + $0xc] sm:$0xf] %v237
    %v239 = vpack.c.bf16 %v230, %v230
    %240 = vst [vmem:[#allocation2 + $0x10] sm:$0xf] %v239
    %v241 = vld [vmem:[#allocation8] sm:$0xf]
    %v242 = vld [vmem:[#allocation2] sm:$0xf]
    %v243 = vld [vmem:[#allocation2 + $0x4] sm:$0xf]
    %v244 = vld [vmem:[#allocation2 + $0x8] sm:$0xf]
    %v245 = vld [vmem:[#allocation2 + $0xc] sm:$0xf]
    %v246 = vld [vmem:[#allocation2 + $0x10] sm:$0xf]
    %v252 = vunpack.c.l.b16 %v242
    %v253 = vunpack.c.l.b16 %v243
    %v254 = vunpack.c.l.b16 %v244
    %v255 = vunpack.c.l.b16 %v245
    %v256 = vunpack.c.l.b16 %v246
    %v257 = vpack.c.b16 %v253, %v252
    %v258 = vpack.c.b16 %v255, %v254
    %v259 = vpack.c.b16 %v256, %v256
    %v263 = vsel %vm156, %v241, 0
    %v266 = vsel %vm160, %v259, 0
    %268 = vmatprep.subr.bf16.mxu0 0
    %269 = vmatpush1.bf16.msra.mxu0 0
    %270 = vmatprep.subr.bf16.mxu0 0
    %271 = vmatpush1.bf16.msra.mxu0 0
    %272 = vmatprep.subr.bf16.mxu0 0
    %273 = vmatpush1.bf16.msra.mxu0 0
    %274 = vmatprep.subr.bf16.mxu0 0
    %275 = vmatpush1.bf16.msra.mxu0 0
    %276 = vmatprep.subr.bf16.mxu0 0
    %277 = vmatpush1.bf16.msra.mxu0 0
    %278 = vmatprep.subr.bf16.mxu0 0
    %279 = vmatpush1.bf16.msra.mxu0 %v266
    %280 = vmatprep.subr.bf16.mxu0 0
    %281 = vmatpush1.bf16.msra.mxu0 %v258
    %282 = vmatprep.subr.bf16.mxu0 0
    %283 = vmatpush1.bf16.msra.mxu0 %v257
    %284 = vmatprep.subr.bf16.mxu0 0
    %285 = vmatpush2.bf16.msra.mxu0 0
    %286 = vmatprep.subr.bf16.mxu0 0
    %287 = vmatpush2.bf16.msra.mxu0 0
    %288 = vmatprep.subr.bf16.mxu0 0
    %289 = vmatpush2.bf16.msra.mxu0 0
    %290 = vmatprep.subr.bf16.mxu0 0
    %291 = vmatpush2.bf16.msra.mxu0 0
    %292 = vmatprep.subr.bf16.mxu0 0
    %293 = vmatpush2.bf16.msra.mxu0 0
    %294 = vmatprep.subr.bf16.mxu0 0
    %295 = vmatpush2.bf16.msra.mxu0 0
    %296 = vmatprep.subr.bf16.mxu0 0
    %297 = vmatpush2.bf16.msra.mxu0 0
    %298 = vmatprep.subr.bf16.mxu0 0
    %299 = vmatpush2.bf16.msra.mxu0 0
    %300 = vmatprep.mubr.bf16.mxu0 0
    %301 = vmatmul.mubr.bf16.gmra.mxu0 %v263
    %v302 = vpop.f32.mrf.mxu0
    %v303 = vadd.f32 0.0, %v302
    %v304 = vpop.f32.mrf.mxu0
    %v305 = vpop.f32.mrf.mxu0
    %v306 = vpop.f32.mrf.mxu0
    %307 = vdwg.mxu0
    %308 = vadd.xlane.f32.xlu0 %v303
    %v309 = vpop.xlane.xlu0 %308
    %v310 = vmul.f32 %v303, %v303
    %311 = vadd.xlane.f32.xlu0 %v310
    %v312 = vpop.xlane.xlu0 %311
    %v313 = vmul.f32 %v309, %v209
    %v314 = vmul.f32 %v312, %v209
    %v315 = vmul.f32 %v313, %v313
    %v316 = vsub.f32 %v314, %v315
    %v317 = vmax.f32 %v316, 0.0
    %v318 = vadd.f32 %v317, 1e-05
    %v319 = vrsqrt.pop %v318
    %v320 = vsub.f32 %v303, %v313
    %v321 = vmul.f32 %v320, %v319
    %v322 = vmul.f32 %v321, 0.75
    %323 = vrot.lane.b32.xlu0 %v321, 1
    %v324 = vpop.permute.xlu0 %323
    %v325 = vsel %vm105, %v324, %v321
    %v326 = vmul.f32 %v325, 0.25
    %v327 = vadd.f32 %v322, %v326
    %328 = vrot.lane.b32.xlu0 %v321, 127
    %v329 = vpop.permute.xlu0 %328
    %v330 = vsel %vm114, %v329, %v321
    %v331 = vmul.f32 %v330, 0.25
    %v332 = vadd.f32 %v322, %v331
    %333 = vrot.lane.b32.xlu0 %v327, 1
    %v334 = vpop.permute.xlu0 %333
    %v335 = vsel %vm105, %v334, 0.0
    %336 = vrot.lane.b32.xlu0 %v332, 1
    %v337 = vpop.permute.xlu0 %336
    %v338 = vsel %vm105, %v337, 0.0
    %339 = vrot.lane.b32.xlu0 %v327, 127
    %v340 = vpop.permute.xlu0 %339
    %v341 = vsel %vm114, %v340, 0.0
    %342 = vrot.lane.b32.xlu0 %v332, 127
    %v343 = vpop.permute.xlu0 %342
    %v344 = vsel %vm114, %v343, 0.0
    %v345 = vpack.c.bf16 %v335, %v335
    %346 = vst [vmem:[#allocation2] sm:$0xf] %v345
    %v347 = vpack.c.bf16 %v338, %v338
    %348 = vst [vmem:[#allocation2 + $0x4] sm:$0xf] %v347
    %v349 = vpack.c.bf16 %v327, %v327
    %350 = vst [vmem:[#allocation2 + $0x8] sm:$0xf] %v349
    %v351 = vpack.c.bf16 %v332, %v332
    %352 = vst [vmem:[#allocation2 + $0xc] sm:$0xf] %v351
    %v353 = vpack.c.bf16 %v341, %v341
    %354 = vst [vmem:[#allocation2 + $0x10] sm:$0xf] %v353
    %v355 = vpack.c.bf16 %v344, %v344
    %356 = vst [vmem:[#allocation2 + $0x14] sm:$0xf] %v355
    %v357 = vld [vmem:[#allocation9] sm:$0xf]
    %v358 = vld [vmem:[#allocation9 + $0x4] sm:$0xf]
    %v359 = vld [vmem:[#allocation2] sm:$0xf]
    %v360 = vld [vmem:[#allocation2 + $0x4] sm:$0xf]
    %v361 = vld [vmem:[#allocation2 + $0x8] sm:$0xf]
    %v362 = vld [vmem:[#allocation2 + $0xc] sm:$0xf]
    %v363 = vld [vmem:[#allocation2 + $0x10] sm:$0xf]
    %v364 = vld [vmem:[#allocation2 + $0x14] sm:$0xf]
    %v367 = vunpack.c.l.b16 %v357
    %v368 = vunpack.c.l.b16 %v358
    %v369 = vpack.c.b16 %v368, %v367
    %v376 = vunpack.c.l.b16 %v359
    %v377 = vunpack.c.l.b16 %v360
    %v378 = vunpack.c.l.b16 %v361
    %v379 = vunpack.c.l.b16 %v362
    %v380 = vunpack.c.l.b16 %v363
    %v381 = vunpack.c.l.b16 %v364
    %v382 = vpack.c.b16 %v377, %v376
    %v383 = vpack.c.b16 %v379, %v378
    %v384 = vpack.c.b16 %v381, %v380
    %vm388 = vcmask 392192
    %v390 = vsel %vm388, %v369, 0
    %392 = vmatprep.subr.bf16.mxu0 0
    %393 = vmatpush1.bf16.msra.mxu0 0
    %394 = vmatprep.subr.bf16.mxu0 0
    %395 = vmatpush1.bf16.msra.mxu0 0
    %396 = vmatprep.subr.bf16.mxu0 0
    %397 = vmatpush1.bf16.msra.mxu0 0
    %398 = vmatprep.subr.bf16.mxu0 0
    %399 = vmatpush1.bf16.msra.mxu0 0
    %400 = vmatprep.subr.bf16.mxu0 0
    %401 = vmatpush1.bf16.msra.mxu0 0
    %402 = vmatprep.subr.bf16.mxu0 0
    %403 = vmatpush1.bf16.msra.mxu0 %v384
    %404 = vmatprep.subr.bf16.mxu0 0
    %405 = vmatpush1.bf16.msra.mxu0 %v383
    %406 = vmatprep.subr.bf16.mxu0 0
    %407 = vmatpush1.bf16.msra.mxu0 %v382
    %408 = vmatprep.subr.bf16.mxu0 0
    %409 = vmatpush2.bf16.msra.mxu0 0
    %410 = vmatprep.subr.bf16.mxu0 0
    %411 = vmatpush2.bf16.msra.mxu0 0
    %412 = vmatprep.subr.bf16.mxu0 0
    %413 = vmatpush2.bf16.msra.mxu0 0
    %414 = vmatprep.subr.bf16.mxu0 0
    %415 = vmatpush2.bf16.msra.mxu0 0
    %416 = vmatprep.subr.bf16.mxu0 0
    %417 = vmatpush2.bf16.msra.mxu0 0
    %418 = vmatprep.subr.bf16.mxu0 0
    %419 = vmatpush2.bf16.msra.mxu0 0
    %420 = vmatprep.subr.bf16.mxu0 0
    %421 = vmatpush2.bf16.msra.mxu0 0
    %422 = vmatprep.subr.bf16.mxu0 0
    %423 = vmatpush2.bf16.msra.mxu0 0
    %424 = vmatprep.mubr.bf16.mxu0 0
    %425 = vmatmul.mubr.bf16.gmra.mxu0 %v390
    %v426 = vpop.f32.mrf.mxu0
    %v427 = vadd.f32 0.0, %v426
    %v428 = vpop.f32.mrf.mxu0
    %v429 = vpop.f32.mrf.mxu0
    %v430 = vadd.f32 0.0, %v429
    %v431 = vpop.f32.mrf.mxu0
    %432 = vdwg.mxu0
    %433 = vadd.xlane.f32.xlu0 %v427
    %v434 = vpop.xlane.xlu0 %433
    %435 = vadd.xlane.f32.xlu0 %v430
    %v436 = vpop.xlane.xlu0 %435
    %v437 = vmul.f32 %v427, %v427
    %v438 = vmul.f32 %v430, %v430
    %439 = vadd.xlane.f32.xlu0 %v437
    %v440 = vpop.xlane.xlu0 %439
    %441 = vadd.xlane.f32.xlu0 %v438
    %v442 = vpop.xlane.xlu0 %441
    %v443 = vadd.f32 %v434, %v436
    %v444 = vadd.f32 %v440, %v442
    %v445 = vrcp.pop 256.0
    %v446 = vmul.f32 %v443, %v445
    %v447 = vmul.f32 %v444, %v445
    %v448 = vmul.f32 %v446, %v446
    %v449 = vsub.f32 %v447, %v448
    %v450 = vmax.f32 %v449, 0.0
    %v451 = vadd.f32 %v450, 1e-05
    %v452 = vrsqrt.pop %v451
    %454 = vset.pattern.permute.xlu0 0
    %455 = vperm.xlu0 %454, %v446
    %v456 = vpop.permute.xlu0 %455
    %v458 = vsub.f32 %v427, %v456
    %v459 = vsub.f32 %v430, %v456
    %461 = vset.pattern.permute.xlu0 0
    %462 = vperm.xlu0 %461, %v452
    %v463 = vpop.permute.xlu0 %462
    %v465 = vmul.f32 %v458, %v463
    %v466 = vmul.f32 %v459, %v463
    %vm467 = vcmp.ge.f32.partialorder %v465, 0.0
    %vm468 = vcmp.ge.f32.partialorder %v466, 0.0
    %v469 = vmul.f32 %v465, 0.01
    %v470 = vmul.f32 %v466, 0.01
    %v471 = vsel %vm467, %v465, %v469
    %v472 = vsel %vm468, %v466, %v470
    %473 = vst [vmem:[#allocation11] sm:$0xff] %v471
    %474 = vst [vmem:[#allocation11 + $0x8] sm:$0xff] %v472
    // Predicated region
    $region38: #{tpu_custom_call.1} parent=1 // pred_check
      _
    $region39: #{tpu_custom_call.1} parent=1 // pred_check_branch
      %476 = sbr.rel (0) target = $region41
    $region40: #{tpu_custom_call.1} parent=1 // pred_region
      %s478 = ssub.s32 256, 256
      %479 = vsyncadd [#allocation5], %s478
      %s480 = sshll.u32 [#allocation11], 4
      %s481 = int_to_ptr.vmem [resolvable:$true] %s480
      %486 = dma.vmem_to_hbm [thread:$0]  %s481, 256, %s5, [#allocation5], 128, 128, 8
    $region41: #{tpu_custom_call.1} parent=1 // pred_fallthru
      _
    // Predicated region
    $region42: #{tpu_custom_call.1} parent=1 // pred_check
      _
    $region43: #{tpu_custom_call.1} parent=1 // pred_check_branch
      %488 = sbr.rel (0) target = $region45
    $region44: #{tpu_custom_call.1} parent=1 // pred_region
      %489 = dma.done [#allocation5], 256
    $region45: #{tpu_custom_call.1} parent=1 // pred_fallthru
      _
    %490 = vsyncpa [#allocation4], 1
    %491 = vsyncpa [#allocation7], 1
    %492 = vsyncpa [#allocation10], 1
    %493 = vsyncpa [#allocation5], 1

</llo_original>
